<compile_context>
chip_gen: v5e
topology: v5e:2x2
jax: 0.10.0
libtpu: 0.0.40
codegen_flags: <defaults>
</compile_context>

<pallas_src>
import math

import jax
import jax.numpy as jnp
from jax.experimental import pallas as pl
from jax.experimental.pallas import tpu as pltpu


def _mlp_kernel(x_ref, w1_ref, b1_ref, w2_ref, b2_ref, o_ref):
    # fc1 + relu.  MXU operands arrive in whatever dtype the wrapper chose
    # (bf16 fast path or f32 exact path); accumulation is always f32.
    h = jnp.dot(x_ref[...], w1_ref[...],
                preferred_element_type=jnp.float32) + b1_ref[...]
    h = jnp.maximum(h, 0.0)                      # relu(fc1(x))
    h = h.astype(w2_ref.dtype)                   # no-op on the f32 path

    # fc2 + relu.
    y = jnp.dot(h, w2_ref[...],
                preferred_element_type=jnp.float32) + b2_ref[...]
    o_ref[...] = jnp.maximum(y, 0.0).astype(o_ref.dtype)


def brainspan_mlp_forward(x, w1, b1, w2, b2, *, tile_m=512,
                          use_bf16_matmul=True, out_dtype=jnp.float32):
    """x: [N, nfeat] f32. w1: [nfeat, nhid1], b1: [1, nhid1],
    w2: [nhid1, nhid1], b2: [1, nhid1]. Returns [N, nhid1] in out_dtype."""
    n, nfeat = x.shape
    nhid1 = w1.shape[1]
    assert tile_m % 8 == 0, "tile_m must be a multiple of the 8-row sublane"

    if use_bf16_matmul:
        # Pre-cast in the wrapper: invariant weights are converted once (not
        # per grid step) and all operand DMA bytes are halved.
        x = x.astype(jnp.bfloat16)
        w1 = w1.astype(jnp.bfloat16)
        w2 = w2.astype(jnp.bfloat16)

    # Single block for small batches (full-extent block is always legal);
    # otherwise tile_m-row tiles with a Pallas-masked partial last block.
    tm = n if n <= tile_m else tile_m
    grid = (pl.cdiv(n, tm),)

    in_bytes = jnp.dtype(x.dtype).itemsize
    w_bytes = jnp.dtype(w1.dtype).itemsize
    out_bytes = jnp.dtype(out_dtype).itemsize
    cost = pl.CostEstimate(
        flops=2 * n * (nfeat + nhid1) * nhid1,
        transcendentals=0,
        bytes_accessed=(n * nfeat * in_bytes
                        + n * nhid1 * out_bytes
                        + (nfeat * nhid1 + nhid1 * nhid1) * w_bytes
                        + 2 * nhid1 * 4))

    out = pl.pallas_call(
        _mlp_kernel,
        out_shape=jax.ShapeDtypeStruct((n, nhid1), out_dtype),
        grid_spec=pltpu.PrefetchScalarGridSpec(
            num_scalar_prefetch=0,
            grid=grid,
            in_specs=[
                pl.BlockSpec((tm, nfeat), lambda i: (i, 0)),     # x tile
                pl.BlockSpec((nfeat, nhid1), lambda i: (0, 0)),  # w1 (resident)
                pl.BlockSpec((1, nhid1), lambda i: (0, 0)),      # b1 (resident)
                pl.BlockSpec((nhid1, nhid1), lambda i: (0, 0)),  # w2 (resident)
                pl.BlockSpec((1, nhid1), lambda i: (0, 0)),      # b2 (resident)
            ],
            out_specs=pl.BlockSpec((tm, nhid1), lambda i: (i, 0)),
        ),
        compiler_params=pltpu.CompilerParams(
            dimension_semantics=("parallel",)),
        cost_estimate=cost,
    )(x, w1, b1, w2, b2)
    return out


def init_linear_params(key, in_features, out_features):
    """Deterministic init matching torch.nn.Linear's default
    (uniform in [-1/sqrt(fan_in), 1/sqrt(fan_in)])."""
    kw, kb = jax.random.split(key)
    bound = 1.0 / math.sqrt(in_features)
    # Stored already transposed: [in_features, out_features].
    w = jax.random.uniform(kw, (in_features, out_features), jnp.float32,
                           minval=-bound, maxval=bound)
    b = jax.random.uniform(kb, (1, out_features), jnp.float32,
                           minval=-bound, maxval=bound)
    return w, b


if __name__ == "__main__":
    # Small shapes consistent with the module: nfeat=32, nhid1=256, batch=8.
    nfeat, nhid1, batch = 32, 256, 8

    key = jax.random.PRNGKey(0)
    kx, k1, k2 = jax.random.split(key, 3)

    x = jax.random.normal(kx, (batch, nfeat), jnp.float32)
    w1, b1 = init_linear_params(k1, nfeat, nhid1)
    w2, b2 = init_linear_params(k2, nhid1, nhid1)

    # Pure-JAX f32 reference (eval-mode forward: dropout is identity).
    ref = jnp.maximum(jnp.maximum(x @ w1 + b1, 0.0) @ w2 + b2, 0.0)

    # 1) Exact-precision path (f32 MXU operands): tight tolerance.
    out_f32 = brainspan_mlp_forward(x, w1, b1, w2, b2, use_bf16_matmul=False)
    out_f32 = jax.block_until_ready(out_f32)
    assert out_f32.shape == (batch, nhid1)
    assert jnp.allclose(out_f32, ref, atol=1e-5, rtol=1e-5), "f32 mismatch"

    # 2) bf16-operand path (v6e/v7x MXU fast path): looser tolerance.
    out_bf16 = brainspan_mlp_forward(x, w1, b1, w2, b2, use_bf16_matmul=True)
    out_bf16 = jax.block_until_ready(out_bf16)
    assert out_bf16.shape == (batch, nhid1)
    assert jnp.allclose(out_bf16, ref, atol=5e-2, rtol=5e-2), "bf16 mismatch"

    # 3) Non-multiple batch + small tile: exercises multi-step grid with a
    #    Pallas-masked partial last block (no pad/slice copies).
    n2 = 40
    x2 = jax.random.normal(jax.random.PRNGKey(1), (n2, nfeat), jnp.float32)
    ref2 = jnp.maximum(jnp.maximum(x2 @ w1 + b1, 0.0) @ w2 + b2, 0.0)
    out2 = brainspan_mlp_forward(x2, w1, b1, w2, b2,
                                 tile_m=16, use_bf16_matmul=False)
    out2 = jax.block_until_ready(out2)
    assert out2.shape == (n2, nhid1)
    assert jnp.allclose(out2, ref2, atol=1e-5, rtol=1e-5), "partial-block mismatch"

    print("KERNEL_OK")
</pallas_src>

<mosaic_0001>
module attributes {stable_mosaic.version = 11 : i64} {
  func.func @_mlp_kernel(%arg0: i32, %arg1: memref<8x32xf32, #tpu.memory_space<vmem>>, %arg2: memref<32x256xf32, #tpu.memory_space<vmem>>, %arg3: memref<1x256xf32, #tpu.memory_space<vmem>>, %arg4: memref<256x256xf32, #tpu.memory_space<vmem>>, %arg5: memref<1x256xf32, #tpu.memory_space<vmem>>, %arg6: memref<8x256xf32, #tpu.memory_space<vmem>>) attributes {dimension_semantics = [#tpu.dimension_semantics<parallel>], iteration_bounds = array<i64: 1>, scalar_prefetch = 0 : i64, scratch_operands = 0 : i64, tpu.core_type = #tpu.core_type<tc>, window_params = [{transform_indices = @transform_0, window_bounds = array<i64: 8, 32>}, {pipeline_mode = #tpu.pipeline_mode<synchronous>, transform_indices = @transform_1, window_bounds = array<i64: 32, 256>}, {pipeline_mode = #tpu.pipeline_mode<synchronous>, transform_indices = @transform_2, window_bounds = array<i64: 1, 256>}, {pipeline_mode = #tpu.pipeline_mode<synchronous>, transform_indices = @transform_3, window_bounds = array<i64: 256, 256>}, {pipeline_mode = #tpu.pipeline_mode<synchronous>, transform_indices = @transform_4, window_bounds = array<i64: 1, 256>}, {transform_indices = @transform_5, window_bounds = array<i64: 8, 256>}]} {
    %c0 = arith.constant 0 : index
    %c0_0 = arith.constant 0 : index
    %0 = vector.load %arg1[%c0, %c0_0] : memref<8x32xf32, #tpu.memory_space<vmem>>, vector<8x32xf32>
    %c0_1 = arith.constant 0 : index
    %c0_2 = arith.constant 0 : index
    %1 = vector.load %arg2[%c0_1, %c0_2] : memref<32x256xf32, #tpu.memory_space<vmem>>, vector<32x256xf32>
    %cst = arith.constant dense<0.000000e+00> : vector<8x256xf32>
    %2 = tpu.matmul %0, %1, %cst {dimension_numbers = #tpu.dot_dimension_numbers<[1], [0], [0], [1], [0, 0, 1, 1], [], []>} : vector<8x32xf32>, vector<32x256xf32>, vector<8x256xf32> -> vector<8x256xf32>
    %c0_3 = arith.constant 0 : index
    %c0_4 = arith.constant 0 : index
    %3 = vector.load %arg3[%c0_3, %c0_4] : memref<1x256xf32, #tpu.memory_space<vmem>>, vector<1x256xf32>
    %4 = vector.broadcast %3 : vector<1x256xf32> to vector<8x256xf32>
    %5 = arith.addf %2, %4 : vector<8x256xf32>
    %cst_5 = arith.constant 0.000000e+00 : f32
    %6 = vector.broadcast %cst_5 : f32 to vector<8x256xf32>
    %7 = arith.maximumf %5, %6 : vector<8x256xf32>
    %c0_6 = arith.constant 0 : index
    %c0_7 = arith.constant 0 : index
    %8 = vector.load %arg4[%c0_6, %c0_7] : memref<256x256xf32, #tpu.memory_space<vmem>>, vector<256x256xf32>
    %cst_8 = arith.constant dense<0.000000e+00> : vector<8x256xf32>
    %9 = tpu.matmul %7, %8, %cst_8 {dimension_numbers = #tpu.dot_dimension_numbers<[1], [0], [0], [1], [0, 0, 1, 1], [], []>} : vector<8x256xf32>, vector<256x256xf32>, vector<8x256xf32> -> vector<8x256xf32>
    %c0_9 = arith.constant 0 : index
    %c0_10 = arith.constant 0 : index
    %10 = vector.load %arg5[%c0_9, %c0_10] : memref<1x256xf32, #tpu.memory_space<vmem>>, vector<1x256xf32>
    %11 = vector.broadcast %10 : vector<1x256xf32> to vector<8x256xf32>
    %12 = arith.addf %9, %11 : vector<8x256xf32>
    %cst_11 = arith.constant 0.000000e+00 : f32
    %13 = vector.broadcast %cst_11 : f32 to vector<8x256xf32>
    %14 = arith.maximumf %12, %13 : vector<8x256xf32>
    %c0_12 = arith.constant 0 : index
    %c0_13 = arith.constant 0 : index
    %15 = vector.load %arg6[%c0_12, %c0_13] : memref<8x256xf32, #tpu.memory_space<vmem>>, vector<8x256xf32>
    tpu.vector_store %arg6[%c0_12, %c0_13], %14 {strides = array<i32>} : memref<8x256xf32, #tpu.memory_space<vmem>>, vector<8x256xf32>,
    return
  }
  func.func @transform_0(%arg0: i32) -> (i32, i32) {
    %c0_i32 = arith.constant 0 : i32
    %c0_i32_0 = arith.constant 0 : i32
    return %arg0, %c0_i32 : i32, i32
  }
  func.func @transform_1(%arg0: i32) -> (i32, i32) {
    %c0_i32 = arith.constant 0 : i32
    %c0_i32_0 = arith.constant 0 : i32
    %c0_i32_1 = arith.constant 0 : i32
    return %c0_i32, %c0_i32_0 : i32, i32
  }
  func.func @transform_2(%arg0: i32) -> (i32, i32) {
    %c0_i32 = arith.constant 0 : i32
    %c0_i32_0 = arith.constant 0 : i32
    %c0_i32_1 = arith.constant 0 : i32
    return %c0_i32, %c0_i32_0 : i32, i32
  }
  func.func @transform_3(%arg0: i32) -> (i32, i32) {
    %c0_i32 = arith.constant 0 : i32
    %c0_i32_0 = arith.constant 0 : i32
    %c0_i32_1 = arith.constant 0 : i32
    return %c0_i32, %c0_i32_0 : i32, i32
  }
  func.func @transform_4(%arg0: i32) -> (i32, i32) {
    %c0_i32 = arith.constant 0 : i32
    %c0_i32_0 = arith.constant 0 : i32
    %c0_i32_1 = arith.constant 0 : i32
    return %c0_i32, %c0_i32_0 : i32, i32
  }
  func.func @transform_5(%arg0: i32) -> (i32, i32) {
    %c0_i32 = arith.constant 0 : i32
    %c0_i32_0 = arith.constant 0 : i32
    return %arg0, %c0_i32 : i32, i32
  }
}

</mosaic_0001>

<llo_original>
// kernel: tpu_custom_call.1
$region0: #{tpu_custom_call.1}
  #allocation0 [shape = 'u32[]', space=smem, size = 0x4, offset = 0x4, fixed_abs, tag = 'smem constant byte address 0x4 - core index']
  #allocation1 [shape = 'u32[72,128]{1,0:T(1,128)}', space=vmem, size = 0x9000, scoped, tag = 'internal scratch']
  %s0 = inlined_call_operand.hbm [shape: f32[8,32], index: 0, kind: input, shape index: {}]
  %s1 = inlined_call_operand.hbm [shape: f32[32,256], index: 1, kind: input, shape index: {}]
  %s2 = inlined_call_operand.hbm [shape: f32[1,256], index: 2, kind: input, shape index: {}]
  %s3 = inlined_call_operand.hbm [shape: f32[256,256], index: 3, kind: input, shape index: {}]
  %s4 = inlined_call_operand.vmem [shape: f32[1,256], index: 4, kind: input, shape index: {}]
  %s5 = inlined_call_operand.hbm [shape: f32[8,256], index: 5, kind: output, shape index: {}]
  %s6 = sld [smem:[#allocation0]]
  $region46: #{tpu_custom_call.1} parent=0
    _
  %s8 = ssub.s32 1, %s6
  %s9 = scalar_select 0, %s8, %s6
  $region1: #{tpu_custom_call.1} parent=0
    #allocation2 [shape = 'u8[4096]{0}', space=vmem, size = 0x1000, scoped, tag = 'input window, operand 0, single buffered']
    #allocation3 [shape = 's32[1]{0}', space=sflag, size = 0x4, scoped, tag = 'scoped memory for tpu_custom_call.1']
    #allocation4 [shape = 's32[1]{0}', space=sflag, size = 0x4, scoped, tag = 'scoped memory for tpu_custom_call.1']
    #allocation5 [shape = 'u8[32768]{0}', space=vmem, size = 0x8000, scoped, tag = 'input window, operand 1, single buffered']
    #allocation6 [shape = 's32[1]{0}', space=sflag, size = 0x4, scoped, tag = 'scoped memory for tpu_custom_call.1']
    #allocation7 [shape = 'u8[1024]{0}', space=vmem, size = 0x400, scoped, tag = 'input window, operand 2, single buffered']
    #allocation8 [shape = 'u8[262144]{0}', space=vmem, size = 0x40000, scoped, tag = 'input window, operand 3, single buffered']
    #allocation9 [shape = 's32[1]{0}', space=sflag, size = 0x4, scoped, tag = 'scoped memory for tpu_custom_call.1']
    #allocation10 [shape = 'u8[8192]{0}', space=vmem, size = 0x2000, scoped, tag = 'output window, operand 0, single buffered']
    %10 = vsyncpa [#allocation3], 0
    %11 = vsyncpa [#allocation6], 0
    %12 = vsyncpa [#allocation9], 0
    %13 = vsyncpa [#allocation4], 0
    // Predicated region
    $region2: #{tpu_custom_call.1} parent=1 // pred_check
      _
    $region3: #{tpu_custom_call.1} parent=1 // pred_check_branch
      %15 = sbr.rel (0) target = $region5
    $region4: #{tpu_custom_call.1} parent=1 // pred_region
      %17 = vsyncadd [#allocation3], 0
      %s19 = sshll.u32 %s0, 4
      %s20 = int_to_ptr.hbm [resolvable:$true] %s19
      %s21 = sshll.u32 [#allocation2], 4
      %s22 = int_to_ptr.vmem [resolvable:$true] %s21
      %24 = dma.hbm_to_vmem [thread:$0]  %s20, 128, %s22, [#allocation3]
    $region5: #{tpu_custom_call.1} parent=1 // pred_fallthru
      _
    // Predicated region
    $region6: #{tpu_custom_call.1} parent=1 // pred_check
      _
    $region7: #{tpu_custom_call.1} parent=1 // pred_check_branch
      %26 = sbr.rel (0) target = $region9
    $region8: #{tpu_custom_call.1} parent=1 // pred_region
      %28 = vsyncadd [#allocation6], 0
      %s29 = sshll.u32 %s1, 4
      %s30 = int_to_ptr.hbm [resolvable:$true] %s29
      %s31 = sshll.u32 [#allocation5], 4
      %s32 = int_to_ptr.vmem [resolvable:$true] %s31
      %37 = dma.hbm_to_vmem [thread:$0]  %s30, 1024, %s32, [#allocation6], 256, 256, 16
    $region9: #{tpu_custom_call.1} parent=1 // pred_fallthru
      _
    // Predicated region
    $region10: #{tpu_custom_call.1} parent=1 // pred_check
      _
    $region11: #{tpu_custom_call.1} parent=1 // pred_check_branch
      %39 = sbr.rel (0) target = $region13
    $region12: #{tpu_custom_call.1} parent=1 // pred_region
      %41 = vsyncadd [#allocation6], 0
      %s43 = sshll.u32 %s2, 4
      %s44 = int_to_ptr.hbm [resolvable:$true] %s43
      %s45 = sshll.u32 [#allocation7], 4
      %s46 = int_to_ptr.vmem [resolvable:$true] %s45
      %48 = dma.hbm_to_vmem [thread:$0]  %s44, 32, %s46, [#allocation6]
    $region13: #{tpu_custom_call.1} parent=1 // pred_fallthru
      _
    // Predicated region
    $region14: #{tpu_custom_call.1} parent=1 // pred_check
      _
    $region15: #{tpu_custom_call.1} parent=1 // pred_check_branch
      %50 = sbr.rel (0) target = $region17
    $region16: #{tpu_custom_call.1} parent=1 // pred_region
      %52 = vsyncadd [#allocation9], 0
      %s53 = sshll.u32 %s3, 4
      %s54 = int_to_ptr.hbm [resolvable:$true] %s53
      %s55 = sshll.u32 [#allocation8], 4
      %s56 = int_to_ptr.vmem [resolvable:$true] %s55
      %61 = dma.hbm_to_vmem [thread:$0]  %s54, 8192, %s56, [#allocation9], 256, 256, 16
    $region17: #{tpu_custom_call.1} parent=1 // pred_fallthru
      _
    // Predicated region
    $region18: #{tpu_custom_call.1} parent=1 // pred_check
      _
    $region19: #{tpu_custom_call.1} parent=1 // pred_check_branch
      %63 = sbr.rel (0) target = $region21
    $region20: #{tpu_custom_call.1} parent=1 // pred_region
      _
    $region21: #{tpu_custom_call.1} parent=1 // pred_fallthru
      _
    // Predicated region
    $region22: #{tpu_custom_call.1} parent=1 // pred_check
      _
    $region23: #{tpu_custom_call.1} parent=1 // pred_check_branch
      %65 = sbr.rel (0) target = $region25
    $region24: #{tpu_custom_call.1} parent=1 // pred_region
      %67 = dma.done [#allocation3], 128
    $region25: #{tpu_custom_call.1} parent=1 // pred_fallthru
      _
    // Predicated region
    $region26: #{tpu_custom_call.1} parent=1 // pred_check
      _
    $region27: #{tpu_custom_call.1} parent=1 // pred_check_branch
      %69 = sbr.rel (0) target = $region29
    $region28: #{tpu_custom_call.1} parent=1 // pred_region
      %71 = dma.done [#allocation6], 1024
    $region29: #{tpu_custom_call.1} parent=1 // pred_fallthru
      _
    // Predicated region
    $region30: #{tpu_custom_call.1} parent=1 // pred_check
      _
    $region31: #{tpu_custom_call.1} parent=1 // pred_check_branch
      %73 = sbr.rel (0) target = $region33
    $region32: #{tpu_custom_call.1} parent=1 // pred_region
      %75 = dma.done [#allocation6], 32
    $region33: #{tpu_custom_call.1} parent=1 // pred_fallthru
      _
    // Predicated region
    $region34: #{tpu_custom_call.1} parent=1 // pred_check
      _
    $region35: #{tpu_custom_call.1} parent=1 // pred_check_branch
      %77 = sbr.rel (0) target = $region37
    $region36: #{tpu_custom_call.1} parent=1 // pred_region
      %79 = dma.done [#allocation9], 8192
    $region37: #{tpu_custom_call.1} parent=1 // pred_fallthru
      _
    %v80 = vld [vmem:[#allocation2] sm:$0xff]
    %v81 = vld [vmem:[#allocation5] sm:$0xff]
    %v82 = vld [vmem:[#allocation5 + $0x8] sm:$0xff]
    %v83 = vld [vmem:[#allocation5 + $0x10] sm:$0xff]
    %v84 = vld [vmem:[#allocation5 + $0x18] sm:$0xff]
    %v85 = vld [vmem:[#allocation5 + $0x20] sm:$0xff]
    %v86 = vld [vmem:[#allocation5 + $0x28] sm:$0xff]
    %v87 = vld [vmem:[#allocation5 + $0x30] sm:$0xff]
    %v88 = vld [vmem:[#allocation5 + $0x38] sm:$0xff]
    %v89 = vld [vmem:[#allocation7] sm:$0x3]
    %v91 = vperm.slane %v89, 0
    %v92 = vperm.slane %v89, 1
    %vm95 = vcmask 261120
    %v97 = vsel %vm95, %v80, 0
    %99 = vmatpush.msra.mxu0 0.0
    %100 = vmatpush.msra.mxu0 0.0
    %101 = vmatpush.msra.mxu0 0.0
    %102 = vmatpush.msra.mxu0 0.0
    %103 = vmatpush.msra.mxu0 0.0
    %104 = vmatpush.msra.mxu0 0.0
    %105 = vmatpush.msra.mxu0 0.0
    %106 = vmatpush.msra.mxu0 0.0
    %107 = vmatpush.msra.mxu0 0.0
    %108 = vmatpush.msra.mxu0 0.0
    %109 = vmatpush.msra.mxu0 0.0
    %110 = vmatpush.msra.mxu0 0.0
    %111 = vmatpush.msra.mxu0 %v87
    %112 = vmatpush.msra.mxu0 %v85
    %113 = vmatpush.msra.mxu0 %v83
    %114 = vmatpush.msra.mxu0 %v81
    %115 = vmatmul.f32.gmra.mxu0 %v97
    %v116 = vpop.f32.mrf.mxu0
    %v117 = vadd.f32 %v91, %v116
    %118 = vdwg.mxu0
    %119 = vmatpush.msra.mxu0 0.0
    %120 = vmatpush.msra.mxu0 0.0
    %121 = vmatpush.msra.mxu0 0.0
    %122 = vmatpush.msra.mxu0 0.0
    %123 = vmatpush.msra.mxu0 0.0
    %124 = vmatpush.msra.mxu0 0.0
    %125 = vmatpush.msra.mxu0 0.0
    %126 = vmatpush.msra.mxu0 0.0
    %127 = vmatpush.msra.mxu0 0.0
    %128 = vmatpush.msra.mxu0 0.0
    %129 = vmatpush.msra.mxu0 0.0
    %130 = vmatpush.msra.mxu0 0.0
    %131 = vmatpush.msra.mxu0 %v88
    %132 = vmatpush.msra.mxu0 %v86
    %133 = vmatpush.msra.mxu0 %v84
    %134 = vmatpush.msra.mxu0 %v82
    %135 = vmatmul.f32.gmra.mxu0 %v97
    %v136 = vpop.f32.mrf.mxu0
    %v137 = vadd.f32 %v92, %v136
    %138 = vdwg.mxu0
    %v139 = vmax.f32 %v117, 0.0
    %v140 = vmax.f32 %v137, 0.0
    %v141 = vld [vmem:[#allocation8] sm:$0xff]
    %v142 = vld [vmem:[#allocation8 + $0x8] sm:$0xff]
    %v143 = vld [vmem:[#allocation8 + $0x10] sm:$0xff]
    %v144 = vld [vmem:[#allocation8 + $0x18] sm:$0xff]
    %v145 = vld [vmem:[#allocation8 + $0x20] sm:$0xff]
    %v146 = vld [vmem:[#allocation8 + $0x28] sm:$0xff]
    %v147 = vld [vmem:[#allocation8 + $0x30] sm:$0xff]
    %v148 = vld [vmem:[#allocation8 + $0x38] sm:$0xff]
    %v149 = vld [vmem:[#allocation8 + $0x40] sm:$0xff]
    %v150 = vld [vmem:[#allocation8 + $0x48] sm:$0xff]
    %v151 = vld [vmem:[#allocation8 + $0x50] sm:$0xff]
    %v152 = vld [vmem:[#allocation8 + $0x58] sm:$0xff]
    %v153 = vld [vmem:[#allocation8 + $0x60] sm:$0xff]
    %v154 = vld [vmem:[#allocation8 + $0x68] sm:$0xff]
    %v155 = vld [vmem:[#allocation8 + $0x70] sm:$0xff]
    %v156 = vld [vmem:[#allocation8 + $0x78] sm:$0xff]
    %v157 = vld [vmem:[#allocation8 + $0x80] sm:$0xff]
    %v158 = vld [vmem:[#allocation8 + $0x88] sm:$0xff]
    %v159 = vld [vmem:[#allocation8 + $0x90] sm:$0xff]
    %v160 = vld [vmem:[#allocation8 + $0x98] sm:$0xff]
    %v161 = vld [vmem:[#allocation8 + $0xa0] sm:$0xff]
    %v162 = vld [vmem:[#allocation8 + $0xa8] sm:$0xff]
    %v163 = vld [vmem:[#allocation8 + $0xb0] sm:$0xff]
    %v164 = vld [vmem:[#allocation8 + $0xb8] sm:$0xff]
    %v165 = vld [vmem:[#allocation8 + $0xc0] sm:$0xff]
    %v166 = vld [vmem:[#allocation8 + $0xc8] sm:$0xff]
    %v167 = vld [vmem:[#allocation8 + $0xd0] sm:$0xff]
    %v168 = vld [vmem:[#allocation8 + $0xd8] sm:$0xff]
    %v169 = vld [vmem:[#allocation8 + $0xe0] sm:$0xff]
    %v170 = vld [vmem:[#allocation8 + $0xe8] sm:$0xff]
    %v171 = vld [vmem:[#allocation8 + $0xf0] sm:$0xff]
    %v172 = vld [vmem:[#allocation8 + $0xf8] sm:$0xff]
    %v173 = vld [vmem:[#allocation8 + $0x100] sm:$0xff]
    %v174 = vld [vmem:[#allocation8 + $0x108] sm:$0xff]
    %v175 = vld [vmem:[#allocation8 + $0x110] sm:$0xff]
    %v176 = vld [vmem:[#allocation8 + $0x118] sm:$0xff]
    %v177 = vld [vmem:[#allocation8 + $0x120] sm:$0xff]
    %v178 = vld [vmem:[#allocation8 + $0x128] sm:$0xff]
    %v179 = vld [vmem:[#allocation8 + $0x130] sm:$0xff]
    %v180 = vld [vmem:[#allocation8 + $0x138] sm:$0xff]
    %v181 = vld [vmem:[#allocation8 + $0x140] sm:$0xff]
    %v182 = vld [vmem:[#allocation8 + $0x148] sm:$0xff]
    %v183 = vld [vmem:[#allocation8 + $0x150] sm:$0xff]
    %v184 = vld [vmem:[#allocation8 + $0x158] sm:$0xff]
    %v185 = vld [vmem:[#allocation8 + $0x160] sm:$0xff]
    %v186 = vld [vmem:[#allocation8 + $0x168] sm:$0xff]
    %v187 = vld [vmem:[#allocation8 + $0x170] sm:$0xff]
    %v188 = vld [vmem:[#allocation8 + $0x178] sm:$0xff]
    %v189 = vld [vmem:[#allocation8 + $0x180] sm:$0xff]
    %v190 = vld [vmem:[#allocation8 + $0x188] sm:$0xff]
    %v191 = vld [vmem:[#allocation8 + $0x190] sm:$0xff]
    %v192 = vld [vmem:[#allocation8 + $0x198] sm:$0xff]
    %v193 = vld [vmem:[#allocation8 + $0x1a0] sm:$0xff]
    %v194 = vld [vmem:[#allocation8 + $0x1a8] sm:$0xff]
    %v195 = vld [vmem:[#allocation8 + $0x1b0] sm:$0xff]
    %v196 = vld [vmem:[#allocation8 + $0x1b8] sm:$0xff]
    %v197 = vld [vmem:[#allocation8 + $0x1c0] sm:$0xff]
    %v198 = vld [vmem:[#allocation8 + $0x1c8] sm:$0xff]
    %v199 = vld [vmem:[#allocation8 + $0x1d0] sm:$0xff]
    %v200 = vld [vmem:[#allocation8 + $0x1d8] sm:$0xff]
    %v201 = vld [vmem:[#allocation8 + $0x1e0] sm:$0xff]
    %v202 = vld [vmem:[#allocation8 + $0x1e8] sm:$0xff]
    %v203 = vld [vmem:[#allocation8 + $0x1f0] sm:$0xff]
    %v204 = vld [vmem:[#allocation8 + $0x1f8] sm:$0xff]
    %v205 = vld [vmem:[%s4] sm:$0x3]
    %v207 = vperm.slane %v205, 0
    %v208 = vperm.slane %v205, 1
    %211 = vmatpush.msra.mxu0 %v171
    %212 = vmatpush.msra.mxu0 %v169
    %213 = vmatpush.msra.mxu0 %v167
    %214 = vmatpush.msra.mxu0 %v165
    %215 = vmatpush.msra.mxu0 %v163
    %216 = vmatpush.msra.mxu0 %v161
    %217 = vmatpush.msra.mxu0 %v159
    %218 = vmatpush.msra.mxu0 %v157
    %219 = vmatpush.msra.mxu0 %v155
    %220 = vmatpush.msra.mxu0 %v153
    %221 = vmatpush.msra.mxu0 %v151
    %222 = vmatpush.msra.mxu0 %v149
    %223 = vmatpush.msra.mxu0 %v147
    %224 = vmatpush.msra.mxu0 %v145
    %225 = vmatpush.msra.mxu0 %v143
    %226 = vmatpush.msra.mxu0 %v141
    %227 = vmatmul.f32.gmra.mxu0 %v139
    %v228 = vpop.f32.mrf.mxu0
    %v229 = vadd.f32 %v207, %v228
    %230 = vdwg.mxu0
    %231 = vmatpush.msra.mxu0 %v203
    %232 = vmatpush.msra.mxu0 %v201
    %233 = vmatpush.msra.mxu0 %v199
    %234 = vmatpush.msra.mxu0 %v197
    %235 = vmatpush.msra.mxu0 %v195
    %236 = vmatpush.msra.mxu0 %v193
    %237 = vmatpush.msra.mxu0 %v191
    %238 = vmatpush.msra.mxu0 %v189
    %239 = vmatpush.msra.mxu0 %v187
    %240 = vmatpush.msra.mxu0 %v185
    %241 = vmatpush.msra.mxu0 %v183
    %242 = vmatpush.msra.mxu0 %v181
    %243 = vmatpush.msra.mxu0 %v179
    %244 = vmatpush.msra.mxu0 %v177
    %245 = vmatpush.msra.mxu0 %v175
    %246 = vmatpush.msra.mxu0 %v173
    %247 = vmatmul.f32.gmra.mxu0 %v140
    %v248 = vpop.f32.mrf.mxu0
    %v249 = vadd.f32 %v229, %v248
    %250 = vdwg.mxu0
    %251 = vmatpush.msra.mxu0 %v172
    %252 = vmatpush.msra.mxu0 %v170
    %253 = vmatpush.msra.mxu0 %v168
    %254 = vmatpush.msra.mxu0 %v166
    %255 = vmatpush.msra.mxu0 %v164
    %256 = vmatpush.msra.mxu0 %v162
    %257 = vmatpush.msra.mxu0 %v160
    %258 = vmatpush.msra.mxu0 %v158
    %259 = vmatpush.msra.mxu0 %v156
    %260 = vmatpush.msra.mxu0 %v154
    %261 = vmatpush.msra.mxu0 %v152
    %262 = vmatpush.msra.mxu0 %v150
    %263 = vmatpush.msra.mxu0 %v148
    %264 = vmatpush.msra.mxu0 %v146
    %265 = vmatpush.msra.mxu0 %v144
    %266 = vmatpush.msra.mxu0 %v142
    %267 = vmatmul.f32.gmra.mxu0 %v139
    %v268 = vpop.f32.mrf.mxu0
    %v269 = vadd.f32 %v208, %v268
    %270 = vdwg.mxu0
    %271 = vmatpush.msra.mxu0 %v204
    %272 = vmatpush.msra.mxu0 %v202
    %273 = vmatpush.msra.mxu0 %v200
    %274 = vmatpush.msra.mxu0 %v198
    %275 = vmatpush.msra.mxu0 %v196
    %276 = vmatpush.msra.mxu0 %v194
    %277 = vmatpush.msra.mxu0 %v192
    %278 = vmatpush.msra.mxu0 %v190
    %279 = vmatpush.msra.mxu0 %v188
    %280 = vmatpush.msra.mxu0 %v186
    %281 = vmatpush.msra.mxu0 %v184
    %282 = vmatpush.msra.mxu0 %v182
    %283 = vmatpush.msra.mxu0 %v180
    %284 = vmatpush.msra.mxu0 %v178
    %285 = vmatpush.msra.mxu0 %v176
    %286 = vmatpush.msra.mxu0 %v174
    %287 = vmatmul.f32.gmra.mxu0 %v140
    %v288 = vpop.f32.mrf.mxu0
    %v289 = vadd.f32 %v269, %v288
    %290 = vdwg.mxu0
    %v291 = vmax.f32 %v249, 0.0
    %v292 = vmax.f32 %v289, 0.0
    %293 = vst [vmem:[#allocation10] sm:$0xff] %v291
    %294 = vst [vmem:[#allocation10 + $0x8] sm:$0xff] %v292
    // Predicated region
    $region38: #{tpu_custom_call.1} parent=1 // pred_check
      _
    $region39: #{tpu_custom_call.1} parent=1 // pred_check_branch
      %296 = sbr.rel (0) target = $region41
    $region40: #{tpu_custom_call.1} parent=1 // pred_region
      %298 = vsyncadd [#allocation4], 0
      %s300 = sshll.u32 [#allocation10], 4
      %s301 = int_to_ptr.vmem [resolvable:$true] %s300
      %s302 = sshll.u32 %s5, 4
      %s303 = int_to_ptr.hbm [resolvable:$true] %s302
      %305 = dma.vmem_to_hbm [thread:$0]  %s301, 256, %s303, [#allocation4]
    $region41: #{tpu_custom_call.1} parent=1 // pred_fallthru
      _
    // Predicated region
    $region42: #{tpu_custom_call.1} parent=1 // pred_check
      _
    $region43: #{tpu_custom_call.1} parent=1 // pred_check_branch
      %307 = sbr.rel (0) target = $region45
    $region44: #{tpu_custom_call.1} parent=1 // pred_region
      %309 = dma.done [#allocation4], 256
    $region45: #{tpu_custom_call.1} parent=1 // pred_fallthru
      _
    %310 = vsyncpa [#allocation3], 1
    %311 = vsyncpa [#allocation6], 1
    %312 = vsyncpa [#allocation9], 1
    %313 = vsyncpa [#allocation4], 1

</llo_original>
